<compile_context>
chip_gen: v7x
topology: tpu7x:2x2x1
jax: 0.10.0
libtpu: 0.0.40
codegen_flags: <defaults>
</compile_context>

<pallas_src>
import functools

import jax
import jax.numpy as jnp
from jax import lax
from jax.experimental import pallas as pl
from jax.experimental.pallas import tpu as pltpu


# ----------------------------------------------------------------------------
# Shared in-kernel recurrence (gate columns pre-permuted to i, f, o, g)
# ----------------------------------------------------------------------------
def _run_recurrence(steps, Bc, H, gx_sc, whh_ref, h_sc, c_sc, out_ref=None):
    """Sequential LSTM recurrence over `steps` timesteps of one chunk.

    gx_sc   : (Tc*Bc, 4H) precomputed x @ W_ih^T + bias for this chunk
    whh_ref : (H, 4H)     W_hh^T ref (read from VMEM inside the loop)
    h_sc, c_sc : (Bc, H)  VMEM recurrent state (persist across chunks)
    out_ref : optional (Tc*Bc, H) ref; per-step hidden written if given.
    """

    @pl.loop(0, steps)
    def _(k):
        row = pl.multiple_of(k * Bc, Bc)  # Bc is a multiple of 8 -> aligned
        gates = gx_sc[pl.ds(row, Bc), :] + jnp.dot(
            h_sc[...].astype(whh_ref.dtype), whh_ref[...],
            preferred_element_type=jnp.float32)
        # One wide tanh pass covers the 3 sigmoid gates (i, f, o); g last.
        sig = 0.5 * jnp.tanh(0.5 * gates[:, :3 * H]) + 0.5
        i_g = sig[:, 0 * H:1 * H]
        f_g = sig[:, 1 * H:2 * H]
        o_g = sig[:, 2 * H:3 * H]
        g_g = jnp.tanh(gates[:, 3 * H:4 * H])
        c_new = f_g * c_sc[...] + i_g * g_g
        h_new = o_g * jnp.tanh(c_new)
        c_sc[...] = c_new
        h_sc[...] = h_new
        if out_ref is not None:
            out_ref[pl.ds(row, Bc), :] = h_new


# ----------------------------------------------------------------------------
# Pallas kernels
# ----------------------------------------------------------------------------
def _lstm_layer_kernel(x_ref, wih_ref, whh_ref, b_ref, out_ref,
                       gx_sc, h_sc, c_sc, *, t_valid):
    """One time-chunk of one LSTM layer.

    x_ref  : (Tc*Bc, D)   this chunk's time-major, batch-chunked inputs
    wih_ref: (D, 4H)      W_ih^T (constant index map -> resident)
    whh_ref: (H, 4H)      W_hh^T
    b_ref  : (1, 4H)      b_ih + b_hh (f32)
    out_ref: (Tc*Bc, H)   hidden output for this chunk
    gx_sc  : (Tc*Bc, 4H)  scratch: hoisted input projection
    h_sc, c_sc : (Bc, H)  VMEM recurrent state carried across time chunks
    """
    Bc, H = h_sc.shape
    Tc = x_ref.shape[0] // Bc
    t_chunk = pl.program_id(1)

    @pl.when(t_chunk == 0)
    def _():
        h_sc[...] = jnp.zeros_like(h_sc)
        c_sc[...] = jnp.zeros_like(c_sc)

    # Hoisted input projection: one MXU matmul for the whole chunk.
    gx_sc[...] = (
        jnp.dot(x_ref[...].astype(wih_ref.dtype), wih_ref[...],
                preferred_element_type=jnp.float32)
        + b_ref[...]
    )

    if t_valid % Tc == 0:
        steps = Tc  # static trip count
    else:
        # Ragged last chunk: only run the valid timesteps, and zero the tail
        # so downstream layers never read uninitialized memory.
        steps = jnp.minimum(Tc, t_valid - t_chunk * Tc)

        @pl.when(t_chunk == pl.num_programs(1) - 1)
        def _():
            out_ref[...] = jnp.zeros_like(out_ref)

    _run_recurrence(steps, Bc, H, gx_sc, whh_ref, h_sc, c_sc, out_ref=out_ref)


def _lstm_last_layer_fc_kernel(x_ref, wih_ref, whh_ref, b_ref,
                               wfc_ref, bfc_ref, y_ref,
                               gx_sc, h_sc, c_sc, *, t_valid):
    """One time-chunk of the last LSTM layer, FC fused into the epilogue.

    Only the final hidden state is needed, so no (T, B, H) HBM writeback.
    wfc_ref: (H, O)  W_fc^T
    bfc_ref: (1, O)
    y_ref  : (Bc, O) written only at the last time chunk
    """
    Bc, H = h_sc.shape
    Tc = x_ref.shape[0] // Bc
    t_chunk = pl.program_id(1)

    @pl.when(t_chunk == 0)
    def _():
        h_sc[...] = jnp.zeros_like(h_sc)
        c_sc[...] = jnp.zeros_like(c_sc)

    gx_sc[...] = (
        jnp.dot(x_ref[...].astype(wih_ref.dtype), wih_ref[...],
                preferred_element_type=jnp.float32)
        + b_ref[...]
    )

    if t_valid % Tc == 0:
        steps = Tc
    else:
        steps = jnp.minimum(Tc, t_valid - t_chunk * Tc)

    _run_recurrence(steps, Bc, H, gx_sc, whh_ref, h_sc, c_sc, out_ref=None)

    @pl.when(t_chunk == pl.num_programs(1) - 1)
    def _():
        y_ref[...] = (
            jnp.dot(h_sc[...].astype(wfc_ref.dtype), wfc_ref[...],
                    preferred_element_type=jnp.float32)
            + bfc_ref[...]
        )


# ----------------------------------------------------------------------------
# Wrappers
# ----------------------------------------------------------------------------
_VMEM_LIMIT = 48 * 1024 * 1024  # explicit scoped-VMEM limit (v5e default is 16 MiB)


def _round_up(n, m):
    return -(-n // m) * m


def _choose_time_chunk(T, Bc, Din, H,
                       budget_bytes=20 * 1024 * 1024, max_tc=256):
    """Pick a time-chunk so the per-chunk VMEM working set stays bounded
    (independent of T) with headroom for double buffering — re-derived per
    shape so it is safe on v7x's 64 MiB VMEM as well as v5e/v6e."""
    G = 4 * H
    itemsize = 4  # f32 activations / scratch
    # x chunk + out chunk (double-buffered) + gx scratch (single), per step
    per_step = Bc * itemsize * (2 * Din + 2 * H + G)
    # weights/biases (assume 2 buffer slots) + slack for FC / bookkeeping
    fixed = 2 * itemsize * (Din * G + H * G + 2 * G) + (1 << 20)
    avail = max(budget_bytes - fixed, per_step)
    return int(max(1, min(T, max_tc, avail // per_step)))


def lstm_layer(x3d, wih_t, whh_t, bias, *, Bc, Tc, t_valid):
    """x3d: (NB, T_pad*Bc, D) time-major flat input per batch chunk.
    Returns (NB, T_pad*Bc, H)."""
    NB, TB, Din = x3d.shape
    H = whh_t.shape[0]
    G = 4 * H
    NT = TB // (Tc * Bc)
    kernel = functools.partial(_lstm_layer_kernel, t_valid=t_valid)
    return pl.pallas_call(
        kernel,
        out_shape=jax.ShapeDtypeStruct((NB, TB, H), jnp.float32),
        grid=(NB, NT),
        in_specs=[
            pl.BlockSpec((None, Tc * Bc, Din), lambda b, t: (b, t, 0)),
            pl.BlockSpec((Din, G), lambda b, t: (0, 0)),   # resident weights
            pl.BlockSpec((H, G), lambda b, t: (0, 0)),
            pl.BlockSpec((1, G), lambda b, t: (0, 0)),
        ],
        out_specs=pl.BlockSpec((None, Tc * Bc, H), lambda b, t: (b, t, 0)),
        scratch_shapes=[
            pltpu.VMEM((Tc * Bc, G), jnp.float32),   # hoisted projection
            pltpu.VMEM((Bc, H), jnp.float32),        # h (carried over chunks)
            pltpu.VMEM((Bc, H), jnp.float32),        # c
        ],
        compiler_params=pltpu.CompilerParams(
            dimension_semantics=("parallel", "arbitrary"),
            vmem_limit_bytes=_VMEM_LIMIT),
    )(x3d, wih_t, whh_t, bias)


def lstm_last_layer_fc(x3d, wih_t, whh_t, bias, wfc_t, bfc, *, Bc, Tc, t_valid):
    """Last layer + fused FC.  x3d: (NB, T_pad*Bc, D).  Returns (NB, Bc, O)."""
    NB, TB, Din = x3d.shape
    H = whh_t.shape[0]
    G = 4 * H
    O = wfc_t.shape[1]
    NT = TB // (Tc * Bc)
    kernel = functools.partial(_lstm_last_layer_fc_kernel, t_valid=t_valid)
    return pl.pallas_call(
        kernel,
        out_shape=jax.ShapeDtypeStruct((NB, Bc, O), jnp.float32),
        grid=(NB, NT),
        in_specs=[
            pl.BlockSpec((None, Tc * Bc, Din), lambda b, t: (b, t, 0)),
            pl.BlockSpec((Din, G), lambda b, t: (0, 0)),
            pl.BlockSpec((H, G), lambda b, t: (0, 0)),
            pl.BlockSpec((1, G), lambda b, t: (0, 0)),
            pl.BlockSpec((H, O), lambda b, t: (0, 0)),
            pl.BlockSpec((1, O), lambda b, t: (0, 0)),
        ],
        out_specs=pl.BlockSpec((None, Bc, O), lambda b, t: (b, 0, 0)),
        scratch_shapes=[
            pltpu.VMEM((Tc * Bc, G), jnp.float32),
            pltpu.VMEM((Bc, H), jnp.float32),
            pltpu.VMEM((Bc, H), jnp.float32),
        ],
        compiler_params=pltpu.CompilerParams(
            dimension_semantics=("parallel", "arbitrary"),
            vmem_limit_bytes=_VMEM_LIMIT),
    )(x3d, wih_t, whh_t, bias, wfc_t, bfc)


def _reorder_gate_cols(a):
    """Permute last-dim gate columns from PyTorch (i, f, g, o) -> (i, f, o, g)
    so the three sigmoid gates are contiguous.  Exact (pure permutation)."""
    H = a.shape[-1] // 4
    return jnp.concatenate(
        [a[..., :2 * H], a[..., 3 * H:], a[..., 2 * H:3 * H]], axis=-1)


def prepare_params(raw, num_layers, compute_dtype=jnp.float32):
    """One-time weight prep outside the forward jit: transpose, fold biases,
    permute gate columns.  compute_dtype=jnp.bfloat16 halves weight DMA/VMEM
    on v6e/v7x (accumulation and gate math stay f32) but loosens the 1e-4
    reference match, so the default is f32."""
    prep = {}
    for layer in range(num_layers):
        p = raw[f"l{layer}"]
        prep[f"l{layer}"] = {
            "wih_t": _reorder_gate_cols(
                jnp.transpose(p["w_ih"])).astype(compute_dtype),   # (D, 4H)
            "whh_t": _reorder_gate_cols(
                jnp.transpose(p["w_hh"])).astype(compute_dtype),   # (H, 4H)
            "bias": _reorder_gate_cols(
                (p["b_ih"] + p["b_hh"]).reshape(1, -1)).astype(jnp.float32),
        }
    prep["wfc_t"] = jnp.transpose(raw["fc_w"]).astype(compute_dtype)  # (H, O)
    prep["bfc"] = raw["fc_b"].reshape(1, -1).astype(jnp.float32)      # (1, O)
    return prep


@functools.partial(jax.jit, static_argnames=("num_layers",))
def lstm_model_forward(x, params, num_layers):
    """x: (B, T, D) batch_first, like the PyTorch module.  Returns (B, O)."""
    B, T, Din = x.shape
    H = params["l0"]["whh_t"].shape[0]

    # ---- static tiling decisions -------------------------------------------
    # Batch: pad to a sublane multiple; split into 2 chunks when big enough so
    # the leading "parallel" grid axis can feed both v7x TensorCores.
    NB = 2 if _round_up(B, 8) >= 16 else 1
    Bp = _round_up(B, 8 * NB)
    Bc = Bp // NB
    # Time: chunk so per-chunk VMEM stays bounded regardless of sequence length.
    Tc = _choose_time_chunk(T, Bc, max(Din, H), H)
    NT = -(-T // Tc)
    T_pad = NT * Tc

    # ---- lay activations out as (NB, T_pad*Bc, feature) ---------------------
    x_tm = jnp.transpose(x, (1, 0, 2))                              # (T, B, D)
    x_tm = jnp.pad(x_tm, ((0, T_pad - T), (0, Bp - B), (0, 0)))     # (T_pad, Bp, D)
    h = (x_tm.reshape(T_pad, NB, Bc, Din)
              .transpose(1, 0, 2, 3)
              .reshape(NB, T_pad * Bc, Din))

    # TODO(synk): for mem-bound multi-layer configs, fuse adjacent layers (or
    # emit bf16 inter-layer activations) to cut the HBM round trip per layer.
    for layer in range(num_layers - 1):
        p = params[f"l{layer}"]
        h = lstm_layer(h, p["wih_t"], p["whh_t"], p["bias"],
                       Bc=Bc, Tc=Tc, t_valid=T)

    p = params[f"l{num_layers - 1}"]
    y = lstm_last_layer_fc(h, p["wih_t"], p["whh_t"], p["bias"],
                           params["wfc_t"], params["bfc"],
                           Bc=Bc, Tc=Tc, t_valid=T)
    return y.reshape(NB * Bc, -1)[:B]


# ----------------------------------------------------------------------------
# Pure-JAX reference (for correctness check), PyTorch parameter layout
# ----------------------------------------------------------------------------
def lstm_model_reference(x, params, num_layers):
    B, T, D = x.shape
    h_seq = x
    for layer in range(num_layers):
        p = params[f"l{layer}"]
        H = p["w_hh"].shape[1]

        def step(carry, x_t, p=p, H=H):
            h, c = carry
            gates = x_t @ p["w_ih"].T + p["b_ih"] + h @ p["w_hh"].T + p["b_hh"]
            i = jax.nn.sigmoid(gates[:, 0 * H:1 * H])
            f = jax.nn.sigmoid(gates[:, 1 * H:2 * H])
            g = jnp.tanh(gates[:, 2 * H:3 * H])
            o = jax.nn.sigmoid(gates[:, 3 * H:4 * H])
            c = f * c + i * g
            h = o * jnp.tanh(c)
            return (h, c), h

        init = (jnp.zeros((B, H), jnp.float32), jnp.zeros((B, H), jnp.float32))
        _, hs = lax.scan(step, init, jnp.transpose(h_seq, (1, 0, 2)))
        h_seq = jnp.transpose(hs, (1, 0, 2))
    return h_seq[:, -1, :] @ params["fc_w"].T + params["fc_b"]


# ----------------------------------------------------------------------------
# Deterministic parameter init (PyTorch-style uniform(-1/sqrt(H), 1/sqrt(H)))
# ----------------------------------------------------------------------------
def init_params(key, input_dim, hidden_dim, num_layers, output_dim):
    params = {}
    k = 1.0 / jnp.sqrt(hidden_dim)
    for layer in range(num_layers):
        d_in = input_dim if layer == 0 else hidden_dim
        key, k1, k2, k3, k4 = jax.random.split(key, 5)
        params[f"l{layer}"] = {
            "w_ih": jax.random.uniform(k1, (4 * hidden_dim, d_in),
                                       jnp.float32, -k, k),
            "w_hh": jax.random.uniform(k2, (4 * hidden_dim, hidden_dim),
                                       jnp.float32, -k, k),
            "b_ih": jax.random.uniform(k3, (4 * hidden_dim,),
                                       jnp.float32, -k, k),
            "b_hh": jax.random.uniform(k4, (4 * hidden_dim,),
                                       jnp.float32, -k, k),
        }
    key, k1, k2 = jax.random.split(key, 3)
    kf = 1.0 / jnp.sqrt(hidden_dim)
    params["fc_w"] = jax.random.uniform(k1, (output_dim, hidden_dim),
                                        jnp.float32, -kf, kf)
    params["fc_b"] = jax.random.uniform(k2, (output_dim,),
                                        jnp.float32, -kf, kf)
    return params


if __name__ == "__main__":
    B, T = 2, 8
    input_dim, hidden_dim, num_layers, output_dim = 8, 32, 2, 4

    key = jax.random.PRNGKey(0)
    key, kx = jax.random.split(key)
    x = jax.random.normal(kx, (B, T, input_dim), jnp.float32)
    raw_params = init_params(key, input_dim, hidden_dim, num_layers, output_dim)
    params = prepare_params(raw_params, num_layers)   # one-time weight prep

    y = lstm_model_forward(x, params, num_layers=num_layers)
    y = jax.block_until_ready(y)

    y_ref = lstm_model_reference(x, raw_params, num_layers)
    assert y.shape == (B, output_dim)
    assert jnp.allclose(y, y_ref, atol=1e-4, rtol=1e-4), "mismatch vs reference"

    print("KERNEL_OK")
</pallas_src>

<mosaic_0001>
module attributes {stable_mosaic.version = 11 : i64} {
  func.func @_lstm_layer_kernel(%arg0: i32, %arg1: i32, %arg2: memref<1x64x8xf32, #tpu.memory_space<vmem>>, %arg3: memref<8x128xf32, #tpu.memory_space<vmem>>, %arg4: memref<32x128xf32, #tpu.memory_space<vmem>>, %arg5: memref<1x128xf32, #tpu.memory_space<vmem>>, %arg6: memref<1x64x32xf32, #tpu.memory_space<vmem>>, %arg7: memref<64x128xf32, #tpu.memory_space<vmem>>, %arg8: memref<8x32xf32, #tpu.memory_space<vmem>>, %arg9: memref<8x32xf32, #tpu.memory_space<vmem>>) attributes {dimension_semantics = [#tpu.dimension_semantics<parallel>, #tpu.dimension_semantics<arbitrary>], iteration_bounds = array<i64: 1, 1>, scalar_prefetch = 0 : i64, scratch_operands = 3 : i64, tpu.core_type = #tpu.core_type<tc>, window_params = [{transform_indices = @transform_0, window_bounds = array<i64: 1, 64, 8>}, {pipeline_mode = #tpu.pipeline_mode<synchronous>, transform_indices = @transform_1, window_bounds = array<i64: 8, 128>}, {pipeline_mode = #tpu.pipeline_mode<synchronous>, transform_indices = @transform_2, window_bounds = array<i64: 32, 128>}, {pipeline_mode = #tpu.pipeline_mode<synchronous>, transform_indices = @transform_3, window_bounds = array<i64: 1, 128>}, {transform_indices = @transform_4, window_bounds = array<i64: 1, 64, 32>}]} {
    %c0_i32 = arith.constant 0 : i32
    %0 = arith.cmpi eq, %arg1, %c0_i32 : i32
    %1 = arith.extui %0 : i1 to i32
    %c0_i32_0 = arith.constant 0 : i32
    %2 = arith.cmpi ne, %1, %c0_i32_0 : i32
    scf.if %2 {
      %cst_11 = arith.constant 0.000000e+00 : f32
      %12 = vector.broadcast %cst_11 : f32 to vector<8x32xf32>
      %c0_12 = arith.constant 0 : index
      %c0_13 = arith.constant 0 : index
      %13 = vector.load %arg8[%c0_12, %c0_13] : memref<8x32xf32, #tpu.memory_space<vmem>>, vector<8x32xf32>
      tpu.vector_store %arg8[%c0_12, %c0_13], %12 {strides = array<i32>} : memref<8x32xf32, #tpu.memory_space<vmem>>, vector<8x32xf32>,
      %cst_14 = arith.constant 0.000000e+00 : f32
      %14 = vector.broadcast %cst_14 : f32 to vector<8x32xf32>
      %c0_15 = arith.constant 0 : index
      %c0_16 = arith.constant 0 : index
      %15 = vector.load %arg9[%c0_15, %c0_16] : memref<8x32xf32, #tpu.memory_space<vmem>>, vector<8x32xf32>
      tpu.vector_store %arg9[%c0_15, %c0_16], %14 {strides = array<i32>} : memref<8x32xf32, #tpu.memory_space<vmem>>, vector<8x32xf32>,
    } else {
    }
    %c0 = arith.constant 0 : index
    %c0_1 = arith.constant 0 : index
    %c0_2 = arith.constant 0 : index
    %3 = vector.load %arg2[%c0, %c0_1, %c0_2] : memref<1x64x8xf32, #tpu.memory_space<vmem>>, vector<1x64x8xf32>
    %4 = vector.shape_cast %3 : vector<1x64x8xf32> to vector<64x8xf32>
    %c0_3 = arith.constant 0 : index
    %c0_4 = arith.constant 0 : index
    %5 = vector.load %arg3[%c0_3, %c0_4] : memref<8x128xf32, #tpu.memory_space<vmem>>, vector<8x128xf32>
    %cst = arith.constant dense<0.000000e+00> : vector<64x128xf32>
    %6 = tpu.matmul %4, %5, %cst {dimension_numbers = #tpu.dot_dimension_numbers<[1], [0], [0], [1], [0, 0, 1, 1], [], []>} : vector<64x8xf32>, vector<8x128xf32>, vector<64x128xf32> -> vector<64x128xf32>
    %c0_5 = arith.constant 0 : index
    %c0_6 = arith.constant 0 : index
    %7 = vector.load %arg5[%c0_5, %c0_6] : memref<1x128xf32, #tpu.memory_space<vmem>>, vector<1x128xf32>
    %8 = vector.broadcast %7 : vector<1x128xf32> to vector<64x128xf32>
    %9 = arith.addf %6, %8 : vector<64x128xf32>
    %c0_7 = arith.constant 0 : index
    %c0_8 = arith.constant 0 : index
    %10 = vector.load %arg7[%c0_7, %c0_8] : memref<64x128xf32, #tpu.memory_space<vmem>>, vector<64x128xf32>
    tpu.vector_store %arg7[%c0_7, %c0_8], %9 {strides = array<i32>} : memref<64x128xf32, #tpu.memory_space<vmem>>, vector<64x128xf32>,
    %c0_i32_9 = arith.constant 0 : i32
    %c8_i32 = arith.constant 8 : i32
    %11 = arith.addi %c0_i32_9, %c8_i32 : i32
    %c1_i32 = arith.constant 1 : i32
    scf.for %arg10 = %c0_i32_9 to %11 step %c1_i32  : i32 {
      %c1_i32_11 = arith.constant 1 : i32
      %12 = arith.muli %arg10, %c1_i32_11 : i32
      %c0_i32_12 = arith.constant 0 : i32
      %13 = arith.addi %c0_i32_12, %12 : i32
      %c8_i32_13 = arith.constant 8 : i32
      %14 = arith.muli %13, %c8_i32_13 : i32
      %15 = tpu.assume_multiple %14, 8 : i32
      %16 = arith.index_cast %15 : i32 to index
      %c0_14 = arith.constant 0 : index
      %17 = vector.load %arg7[%16, %c0_14] : memref<64x128xf32, #tpu.memory_space<vmem>>, vector<8x128xf32>
      %c0_15 = arith.constant 0 : index
      %c0_16 = arith.constant 0 : index
      %18 = vector.load %arg8[%c0_15, %c0_16] : memref<8x32xf32, #tpu.memory_space<vmem>>, vector<8x32xf32>
      %c0_17 = arith.constant 0 : index
      %c0_18 = arith.constant 0 : index
      %19 = vector.load %arg4[%c0_17, %c0_18] : memref<32x128xf32, #tpu.memory_space<vmem>>, vector<32x128xf32>
      %cst_19 = arith.constant dense<0.000000e+00> : vector<8x128xf32>
      %20 = tpu.matmul %18, %19, %cst_19 {dimension_numbers = #tpu.dot_dimension_numbers<[1], [0], [0], [1], [0, 0, 1, 1], [], []>} : vector<8x32xf32>, vector<32x128xf32>, vector<8x128xf32> -> vector<8x128xf32>
      %21 = arith.addf %17, %20 : vector<8x128xf32>
      %22 = vector.extract_strided_slice %21 {offsets = [0, 0], sizes = [8, 96], strides = [1, 1]} : vector<8x128xf32> to vector<8x96xf32>
      %cst_20 = arith.constant 5.000000e-01 : f32
      %23 = vector.broadcast %cst_20 : f32 to vector<8x96xf32>
      %24 = arith.mulf %23, %22 : vector<8x96xf32>
      %25 = math.tanh %24 : vector<8x96xf32>
      %cst_21 = arith.constant 5.000000e-01 : f32
      %26 = vector.broadcast %cst_21 : f32 to vector<8x96xf32>
      %27 = arith.mulf %26, %25 : vector<8x96xf32>
      %cst_22 = arith.constant 5.000000e-01 : f32
      %28 = vector.broadcast %cst_22 : f32 to vector<8x96xf32>
      %29 = arith.addf %27, %28 : vector<8x96xf32>
      %30 = vector.extract_strided_slice %29 {offsets = [0, 0], sizes = [8, 32], strides = [1, 1]} : vector<8x96xf32> to vector<8x32xf32>
      %31 = vector.extract_strided_slice %29 {offsets = [0, 32], sizes = [8, 32], strides = [1, 1]} : vector<8x96xf32> to vector<8x32xf32>
      %32 = vector.extract_strided_slice %29 {offsets = [0, 64], sizes = [8, 32], strides = [1, 1]} : vector<8x96xf32> to vector<8x32xf32>
      %33 = vector.extract_strided_slice %21 {offsets = [0, 96], sizes = [8, 32], strides = [1, 1]} : vector<8x128xf32> to vector<8x32xf32>
      %34 = math.tanh %33 : vector<8x32xf32>
      %c0_23 = arith.constant 0 : index
      %c0_24 = arith.constant 0 : index
      %35 = vector.load %arg9[%c0_23, %c0_24] : memref<8x32xf32, #tpu.memory_space<vmem>>, vector<8x32xf32>
      %36 = arith.mulf %31, %35 : vector<8x32xf32>
      %37 = arith.mulf %30, %34 : vector<8x32xf32>
      %38 = arith.addf %36, %37 : vector<8x32xf32>
      %39 = math.tanh %38 : vector<8x32xf32>
      %40 = arith.mulf %32, %39 : vector<8x32xf32>
      %c0_25 = arith.constant 0 : index
      %c0_26 = arith.constant 0 : index
      %41 = vector.load %arg9[%c0_25, %c0_26] : memref<8x32xf32, #tpu.memory_space<vmem>>, vector<8x32xf32>
      tpu.vector_store %arg9[%c0_25, %c0_26], %38 {strides = array<i32>} : memref<8x32xf32, #tpu.memory_space<vmem>>, vector<8x32xf32>,
      %c0_27 = arith.constant 0 : index
      %c0_28 = arith.constant 0 : index
      %42 = vector.load %arg8[%c0_27, %c0_28] : memref<8x32xf32, #tpu.memory_space<vmem>>, vector<8x32xf32>
      tpu.vector_store %arg8[%c0_27, %c0_28], %40 {strides = array<i32>} : memref<8x32xf32, #tpu.memory_space<vmem>>, vector<8x32xf32>,
      %c0_29 = arith.constant 0 : index
      %43 = arith.index_cast %15 : i32 to index
      %c0_30 = arith.constant 0 : index
      %44 = vector.load %arg6[%c0_29, %43, %c0_30] : memref<1x64x32xf32, #tpu.memory_space<vmem>>, vector<1x8x32xf32>
      %45 = vector.shape_cast %44 : vector<1x8x32xf32> to vector<8x32xf32>
      %46 = vector.shape_cast %40 : vector<8x32xf32> to vector<1x8x32xf32>
      tpu.vector_store %arg6[%c0_29, %43, %c0_30], %46 {strides = array<i32>} : memref<1x64x32xf32, #tpu.memory_space<vmem>>, vector<1x8x32xf32>,
    }
    %c8_i32_10 = arith.constant 8 : i32
    return
  }
  func.func @transform_0(%arg0: i32, %arg1: i32) -> (i32, i32, i32) {
    %c0_i32 = arith.constant 0 : i32
    %c0_i32_0 = arith.constant 0 : i32
    return %arg0, %arg1, %c0_i32 : i32, i32, i32
  }
  func.func @transform_1(%arg0: i32, %arg1: i32) -> (i32, i32) {
    %c0_i32 = arith.constant 0 : i32
    %c0_i32_0 = arith.constant 0 : i32
    %c0_i32_1 = arith.constant 0 : i32
    return %c0_i32, %c0_i32_0 : i32, i32
  }
  func.func @transform_2(%arg0: i32, %arg1: i32) -> (i32, i32) {
    %c0_i32 = arith.constant 0 : i32
    %c0_i32_0 = arith.constant 0 : i32
    %c0_i32_1 = arith.constant 0 : i32
    return %c0_i32, %c0_i32_0 : i32, i32
  }
  func.func @transform_3(%arg0: i32, %arg1: i32) -> (i32, i32) {
    %c0_i32 = arith.constant 0 : i32
    %c0_i32_0 = arith.constant 0 : i32
    %c0_i32_1 = arith.constant 0 : i32
    return %c0_i32, %c0_i32_0 : i32, i32
  }
  func.func @transform_4(%arg0: i32, %arg1: i32) -> (i32, i32, i32) {
    %c0_i32 = arith.constant 0 : i32
    %c0_i32_0 = arith.constant 0 : i32
    return %arg0, %arg1, %c0_i32 : i32, i32, i32
  }
}

module attributes {stable_mosaic.version = 11 : i64} {
  func.func @_lstm_last_layer_fc_kernel(%arg0: i32, %arg1: i32, %arg2: memref<1x64x32xf32, #tpu.memory_space<vmem>>, %arg3: memref<32x128xf32, #tpu.memory_space<vmem>>, %arg4: memref<32x128xf32, #tpu.memory_space<vmem>>, %arg5: memref<1x128xf32, #tpu.memory_space<vmem>>, %arg6: memref<32x4xf32, #tpu.memory_space<vmem>>, %arg7: memref<1x4xf32, #tpu.memory_space<vmem>>, %arg8: memref<1x8x4xf32, #tpu.memory_space<vmem>>, %arg9: memref<64x128xf32, #tpu.memory_space<vmem>>, %arg10: memref<8x32xf32, #tpu.memory_space<vmem>>, %arg11: memref<8x32xf32, #tpu.memory_space<vmem>>) attributes {dimension_semantics = [#tpu.dimension_semantics<parallel>, #tpu.dimension_semantics<arbitrary>], iteration_bounds = array<i64: 1, 1>, scalar_prefetch = 0 : i64, scratch_operands = 3 : i64, tpu.core_type = #tpu.core_type<tc>, window_params = [{transform_indices = @transform_0, window_bounds = array<i64: 1, 64, 32>}, {pipeline_mode = #tpu.pipeline_mode<synchronous>, transform_indices = @transform_1, window_bounds = array<i64: 32, 128>}, {pipeline_mode = #tpu.pipeline_mode<synchronous>, transform_indices = @transform_2, window_bounds = array<i64: 32, 128>}, {pipeline_mode = #tpu.pipeline_mode<synchronous>, transform_indices = @transform_3, window_bounds = array<i64: 1, 128>}, {pipeline_mode = #tpu.pipeline_mode<synchronous>, transform_indices = @transform_4, window_bounds = array<i64: 32, 4>}, {pipeline_mode = #tpu.pipeline_mode<synchronous>, transform_indices = @transform_5, window_bounds = array<i64: 1, 4>}, {transform_indices = @transform_6, window_bounds = array<i64: 1, 8, 4>}]} {
    %c0_i32 = arith.constant 0 : i32
    %0 = arith.cmpi eq, %arg1, %c0_i32 : i32
    %1 = arith.extui %0 : i1 to i32
    %c0_i32_0 = arith.constant 0 : i32
    %2 = arith.cmpi ne, %1, %c0_i32_0 : i32
    scf.if %2 {
      %cst_13 = arith.constant 0.000000e+00 : f32
      %15 = vector.broadcast %cst_13 : f32 to vector<8x32xf32>
      %c0_14 = arith.constant 0 : index
      %c0_15 = arith.constant 0 : index
      %16 = vector.load %arg10[%c0_14, %c0_15] : memref<8x32xf32, #tpu.memory_space<vmem>>, vector<8x32xf32>
      tpu.vector_store %arg10[%c0_14, %c0_15], %15 {strides = array<i32>} : memref<8x32xf32, #tpu.memory_space<vmem>>, vector<8x32xf32>,
      %cst_16 = arith.constant 0.000000e+00 : f32
      %17 = vector.broadcast %cst_16 : f32 to vector<8x32xf32>
      %c0_17 = arith.constant 0 : index
      %c0_18 = arith.constant 0 : index
      %18 = vector.load %arg11[%c0_17, %c0_18] : memref<8x32xf32, #tpu.memory_space<vmem>>, vector<8x32xf32>
      tpu.vector_store %arg11[%c0_17, %c0_18], %17 {strides = array<i32>} : memref<8x32xf32, #tpu.memory_space<vmem>>, vector<8x32xf32>,
    } else {
    }
    %c0 = arith.constant 0 : index
    %c0_1 = arith.constant 0 : index
    %c0_2 = arith.constant 0 : index
    %3 = vector.load %arg2[%c0, %c0_1, %c0_2] : memref<1x64x32xf32, #tpu.memory_space<vmem>>, vector<1x64x32xf32>
    %4 = vector.shape_cast %3 : vector<1x64x32xf32> to vector<64x32xf32>
    %c0_3 = arith.constant 0 : index
    %c0_4 = arith.constant 0 : index
    %5 = vector.load %arg3[%c0_3, %c0_4] : memref<32x128xf32, #tpu.memory_space<vmem>>, vector<32x128xf32>
    %cst = arith.constant dense<0.000000e+00> : vector<64x128xf32>
    %6 = tpu.matmul %4, %5, %cst {dimension_numbers = #tpu.dot_dimension_numbers<[1], [0], [0], [1], [0, 0, 1, 1], [], []>} : vector<64x32xf32>, vector<32x128xf32>, vector<64x128xf32> -> vector<64x128xf32>
    %c0_5 = arith.constant 0 : index
    %c0_6 = arith.constant 0 : index
    %7 = vector.load %arg5[%c0_5, %c0_6] : memref<1x128xf32, #tpu.memory_space<vmem>>, vector<1x128xf32>
    %8 = vector.broadcast %7 : vector<1x128xf32> to vector<64x128xf32>
    %9 = arith.addf %6, %8 : vector<64x128xf32>
    %c0_7 = arith.constant 0 : index
    %c0_8 = arith.constant 0 : index
    %10 = vector.load %arg9[%c0_7, %c0_8] : memref<64x128xf32, #tpu.memory_space<vmem>>, vector<64x128xf32>
    tpu.vector_store %arg9[%c0_7, %c0_8], %9 {strides = array<i32>} : memref<64x128xf32, #tpu.memory_space<vmem>>, vector<64x128xf32>,
    %c0_i32_9 = arith.constant 0 : i32
    %c8_i32 = arith.constant 8 : i32
    %11 = arith.addi %c0_i32_9, %c8_i32 : i32
    %c1_i32 = arith.constant 1 : i32
    scf.for %arg12 = %c0_i32_9 to %11 step %c1_i32  : i32 {
      %c1_i32_13 = arith.constant 1 : i32
      %15 = arith.muli %arg12, %c1_i32_13 : i32
      %c0_i32_14 = arith.constant 0 : i32
      %16 = arith.addi %c0_i32_14, %15 : i32
      %c8_i32_15 = arith.constant 8 : i32
      %17 = arith.muli %16, %c8_i32_15 : i32
      %18 = tpu.assume_multiple %17, 8 : i32
      %19 = arith.index_cast %18 : i32 to index
      %c0_16 = arith.constant 0 : index
      %20 = vector.load %arg9[%19, %c0_16] : memref<64x128xf32, #tpu.memory_space<vmem>>, vector<8x128xf32>
      %c0_17 = arith.constant 0 : index
      %c0_18 = arith.constant 0 : index
      %21 = vector.load %arg10[%c0_17, %c0_18] : memref<8x32xf32, #tpu.memory_space<vmem>>, vector<8x32xf32>
      %c0_19 = arith.constant 0 : index
      %c0_20 = arith.constant 0 : index
      %22 = vector.load %arg4[%c0_19, %c0_20] : memref<32x128xf32, #tpu.memory_space<vmem>>, vector<32x128xf32>
      %cst_21 = arith.constant dense<0.000000e+00> : vector<8x128xf32>
      %23 = tpu.matmul %21, %22, %cst_21 {dimension_numbers = #tpu.dot_dimension_numbers<[1], [0], [0], [1], [0, 0, 1, 1], [], []>} : vector<8x32xf32>, vector<32x128xf32>, vector<8x128xf32> -> vector<8x128xf32>
      %24 = arith.addf %20, %23 : vector<8x128xf32>
      %25 = vector.extract_strided_slice %24 {offsets = [0, 0], sizes = [8, 96], strides = [1, 1]} : vector<8x128xf32> to vector<8x96xf32>
      %cst_22 = arith.constant 5.000000e-01 : f32
      %26 = vector.broadcast %cst_22 : f32 to vector<8x96xf32>
      %27 = arith.mulf %26, %25 : vector<8x96xf32>
      %28 = math.tanh %27 : vector<8x96xf32>
      %cst_23 = arith.constant 5.000000e-01 : f32
      %29 = vector.broadcast %cst_23 : f32 to vector<8x96xf32>
      %30 = arith.mulf %29, %28 : vector<8x96xf32>
      %cst_24 = arith.constant 5.000000e-01 : f32
      %31 = vector.broadcast %cst_24 : f32 to vector<8x96xf32>
      %32 = arith.addf %30, %31 : vector<8x96xf32>
      %33 = vector.extract_strided_slice %32 {offsets = [0, 0], sizes = [8, 32], strides = [1, 1]} : vector<8x96xf32> to vector<8x32xf32>
      %34 = vector.extract_strided_slice %32 {offsets = [0, 32], sizes = [8, 32], strides = [1, 1]} : vector<8x96xf32> to vector<8x32xf32>
      %35 = vector.extract_strided_slice %32 {offsets = [0, 64], sizes = [8, 32], strides = [1, 1]} : vector<8x96xf32> to vector<8x32xf32>
      %36 = vector.extract_strided_slice %24 {offsets = [0, 96], sizes = [8, 32], strides = [1, 1]} : vector<8x128xf32> to vector<8x32xf32>
      %37 = math.tanh %36 : vector<8x32xf32>
      %c0_25 = arith.constant 0 : index
      %c0_26 = arith.constant 0 : index
      %38 = vector.load %arg11[%c0_25, %c0_26] : memref<8x32xf32, #tpu.memory_space<vmem>>, vector<8x32xf32>
      %39 = arith.mulf %34, %38 : vector<8x32xf32>
      %40 = arith.mulf %33, %37 : vector<8x32xf32>
      %41 = arith.addf %39, %40 : vector<8x32xf32>
      %42 = math.tanh %41 : vector<8x32xf32>
      %43 = arith.mulf %35, %42 : vector<8x32xf32>
      %c0_27 = arith.constant 0 : index
      %c0_28 = arith.constant 0 : index
      %44 = vector.load %arg11[%c0_27, %c0_28] : memref<8x32xf32, #tpu.memory_space<vmem>>, vector<8x32xf32>
      tpu.vector_store %arg11[%c0_27, %c0_28], %41 {strides = array<i32>} : memref<8x32xf32, #tpu.memory_space<vmem>>, vector<8x32xf32>,
      %c0_29 = arith.constant 0 : index
      %c0_30 = arith.constant 0 : index
      %45 = vector.load %arg10[%c0_29, %c0_30] : memref<8x32xf32, #tpu.memory_space<vmem>>, vector<8x32xf32>
      tpu.vector_store %arg10[%c0_29, %c0_30], %43 {strides = array<i32>} : memref<8x32xf32, #tpu.memory_space<vmem>>, vector<8x32xf32>,
    }
    %c8_i32_10 = arith.constant 8 : i32
    %c0_i32_11 = arith.constant 0 : i32
    %12 = arith.cmpi eq, %arg1, %c0_i32_11 : i32
    %13 = arith.extui %12 : i1 to i32
    %c0_i32_12 = arith.constant 0 : i32
    %14 = arith.cmpi ne, %13, %c0_i32_12 : i32
    scf.if %14 {
      %c0_13 = arith.constant 0 : index
      %c0_14 = arith.constant 0 : index
      %15 = vector.load %arg10[%c0_13, %c0_14] : memref<8x32xf32, #tpu.memory_space<vmem>>, vector<8x32xf32>
      %c0_15 = arith.constant 0 : index
      %c0_16 = arith.constant 0 : index
      %16 = vector.load %arg6[%c0_15, %c0_16] : memref<32x4xf32, #tpu.memory_space<vmem>>, vector<32x4xf32>
      %cst_17 = arith.constant dense<0.000000e+00> : vector<8x4xf32>
      %17 = tpu.matmul %15, %16, %cst_17 {dimension_numbers = #tpu.dot_dimension_numbers<[1], [0], [0], [1], [0, 0, 1, 1], [], []>} : vector<8x32xf32>, vector<32x4xf32>, vector<8x4xf32> -> vector<8x4xf32>
      %c0_18 = arith.constant 0 : index
      %c0_19 = arith.constant 0 : index
      %18 = vector.load %arg7[%c0_18, %c0_19] : memref<1x4xf32, #tpu.memory_space<vmem>>, vector<1x4xf32>
      %19 = vector.broadcast %18 : vector<1x4xf32> to vector<8x4xf32>
      %20 = arith.addf %17, %19 : vector<8x4xf32>
      %c0_20 = arith.constant 0 : index
      %c0_21 = arith.constant 0 : index
      %c0_22 = arith.constant 0 : index
      %21 = vector.load %arg8[%c0_20, %c0_21, %c0_22] : memref<1x8x4xf32, #tpu.memory_space<vmem>>, vector<1x8x4xf32>
      %22 = vector.shape_cast %21 : vector<1x8x4xf32> to vector<8x4xf32>
      %23 = vector.shape_cast %20 : vector<8x4xf32> to vector<1x8x4xf32>
      tpu.vector_store %arg8[%c0_20, %c0_21, %c0_22], %23 {strides = array<i32>} : memref<1x8x4xf32, #tpu.memory_space<vmem>>, vector<1x8x4xf32>,
    } else {
    }
    return
  }
  func.func @transform_0(%arg0: i32, %arg1: i32) -> (i32, i32, i32) {
    %c0_i32 = arith.constant 0 : i32
    %c0_i32_0 = arith.constant 0 : i32
    return %arg0, %arg1, %c0_i32 : i32, i32, i32
  }
  func.func @transform_1(%arg0: i32, %arg1: i32) -> (i32, i32) {
    %c0_i32 = arith.constant 0 : i32
    %c0_i32_0 = arith.constant 0 : i32
    %c0_i32_1 = arith.constant 0 : i32
    return %c0_i32, %c0_i32_0 : i32, i32
  }
  func.func @transform_2(%arg0: i32, %arg1: i32) -> (i32, i32) {
    %c0_i32 = arith.constant 0 : i32
    %c0_i32_0 = arith.constant 0 : i32
    %c0_i32_1 = arith.constant 0 : i32
    return %c0_i32, %c0_i32_0 : i32, i32
  }
  func.func @transform_3(%arg0: i32, %arg1: i32) -> (i32, i32) {
    %c0_i32 = arith.constant 0 : i32
    %c0_i32_0 = arith.constant 0 : i32
    %c0_i32_1 = arith.constant 0 : i32
    return %c0_i32, %c0_i32_0 : i32, i32
  }
  func.func @transform_4(%arg0: i32, %arg1: i32) -> (i32, i32) {
    %c0_i32 = arith.constant 0 : i32
    %c0_i32_0 = arith.constant 0 : i32
    %c0_i32_1 = arith.constant 0 : i32
    return %c0_i32, %c0_i32_0 : i32, i32
  }
  func.func @transform_5(%arg0: i32, %arg1: i32) -> (i32, i32) {
    %c0_i32 = arith.constant 0 : i32
    %c0_i32_0 = arith.constant 0 : i32
    %c0_i32_1 = arith.constant 0 : i32
    return %c0_i32, %c0_i32_0 : i32, i32
  }
  func.func @transform_6(%arg0: i32, %arg1: i32) -> (i32, i32, i32) {
    %c0_i32 = arith.constant 0 : i32
    %c0_i32_0 = arith.constant 0 : i32
    %c0_i32_1 = arith.constant 0 : i32
    return %arg0, %c0_i32, %c0_i32_0 : i32, i32, i32
  }
}

</mosaic_0001>

<llo_original>
// kernel: lstm_model_forward.2
$region0: #{lstm_model_forward.2}
  #allocation0 [shape = 'u32[]', space=smem, size = 0x4, offset = 0x4, fixed_abs, tag = 'smem constant byte address 0x4 - core index']
  #allocation1 [shape = 'u32[144,128]{1,0:T(1,128)}', space=vmem, size = 0x12000, scoped, tag = 'internal scratch']
  #allocation2 [shape = 'f32[64,128]{1,0:T(8,128)}', space=vmem, size = 0x8000, scoped, tag = 'scratch operand']
  #allocation3 [shape = 'f32[8,32]{1,0:T(8,128)}', space=vmem, size = 0x1000, scoped, tag = 'scratch operand']
  #allocation4 [shape = 'f32[8,32]{1,0:T(8,128)}', space=vmem, size = 0x1000, scoped, tag = 'scratch operand']
  %s0 = inlined_call_operand.vmem [shape: f32[1,64,8], index: 0, kind: input, shape index: {}]
  %s1 = inlined_call_operand.vmem [shape: f32[8,128], index: 1, kind: input, shape index: {}]
  %s2 = inlined_call_operand.vmem [shape: f32[32,128], index: 2, kind: input, shape index: {}]
  %s3 = inlined_call_operand.vmem [shape: f32[1,128], index: 3, kind: input, shape index: {}]
  %s4 = inlined_call_operand.vmem [shape: f32[1,64,32], index: 4, kind: output, shape index: {}]
  %s5 = sld [smem:[#allocation0]]
  $region37: #{lstm_model_forward.2} parent=0
    _
  %s7 = ssub.s32 1, %s5
  %s8 = scalar_select 0, %s7, %s5
  // Predicated region
  $region2: #{lstm_model_forward.2} parent=0 // pred_check
    _
  $region3: #{lstm_model_forward.2} parent=0 // pred_check_branch
    %10 = sbr.rel (0) target = $region5
  $region4: #{lstm_model_forward.2} parent=0 // pred_region
    _
  $region5: #{lstm_model_forward.2} parent=0 // pred_fallthru
    _
  // Predicated region
  $region6: #{lstm_model_forward.2} parent=0 // pred_check
    _
  $region7: #{lstm_model_forward.2} parent=0 // pred_check_branch
    %12 = sbr.rel (0) target = $region9
  $region8: #{lstm_model_forward.2} parent=0 // pred_region
    _
  $region9: #{lstm_model_forward.2} parent=0 // pred_fallthru
    _
  // Predicated region
  $region10: #{lstm_model_forward.2} parent=0 // pred_check
    _
  $region11: #{lstm_model_forward.2} parent=0 // pred_check_branch
    %14 = sbr.rel (0) target = $region13
  $region12: #{lstm_model_forward.2} parent=0 // pred_region
    _
  $region13: #{lstm_model_forward.2} parent=0 // pred_fallthru
    _
  // Predicated region
  $region14: #{lstm_model_forward.2} parent=0 // pred_check
    _
  $region15: #{lstm_model_forward.2} parent=0 // pred_check_branch
    %16 = sbr.rel (0) target = $region17
  $region16: #{lstm_model_forward.2} parent=0 // pred_region
    _
  $region17: #{lstm_model_forward.2} parent=0 // pred_fallthru
    _
  %p17 = scmp.eq.s32.totalorder 0, 0
  // Predicated region
  $region18: #{lstm_model_forward.2} parent=0 // pred_check
    %p18 = pneg %p17
  $region19: #{lstm_model_forward.2} parent=0 // pred_check_branch
    %20 = sbr.rel (%p18) target = $region21
  $region20: #{lstm_model_forward.2} parent=0 // pred_region
    %vm21 = vcmask 261120
    %22 = vst.msk [vmem:[#allocation3] sm:$0xff] %vm21, 0.0
    %23 = vst.msk [vmem:[#allocation4] sm:$0xff] %vm21, 0.0
  $region21: #{lstm_model_forward.2} parent=0 // pred_fallthru
    _
  %v24 = vld [vmem:[%s0] sm:$0xff]
  %v25 = vld [vmem:[%s0 + $0x8] sm:$0xff]
  %v26 = vld [vmem:[%s0 + $0x10] sm:$0xff]
  %v27 = vld [vmem:[%s0 + $0x18] sm:$0xff]
  %v28 = vld [vmem:[%s0 + $0x20] sm:$0xff]
  %v29 = vld [vmem:[%s0 + $0x28] sm:$0xff]
  %v30 = vld [vmem:[%s0 + $0x30] sm:$0xff]
  %v31 = vld [vmem:[%s0 + $0x38] sm:$0xff]
  %v32 = vld [vmem:[%s1] sm:$0xff]
  %v33 = vld [vmem:[%s3] sm:$0x1]
  %v35 = vlaneseq
  %v36 = vshrl.u32 %v35, 7
  %v37 = vsub.s32 0, %v36
  %v38 = vrot.slane %v33, %v37
  %vm40 = vcmask 64512
  %v42 = vsel %vm40, %v24, 0
  %v45 = vsel %vm40, %v25, 0
  %v48 = vsel %vm40, %v26, 0
  %v51 = vsel %vm40, %v27, 0
  %v54 = vsel %vm40, %v28, 0
  %v57 = vsel %vm40, %v29, 0
  %v60 = vsel %vm40, %v30, 0
  %v63 = vsel %vm40, %v31, 0
  %65 = vmatprep.subr.mxu0 0.0
  %66 = vmatpush1.msra.mxu0 %v32
  %67 = vmatprep.subr.mxu0 0.0
  %68 = vmatpush1.msra.mxu0 0.0
  %69 = vmatprep.subr.mxu0 0.0
  %70 = vmatpush1.msra.mxu0 0.0
  %71 = vmatprep.subr.mxu0 0.0
  %72 = vmatpush1.msra.mxu0 0.0
  %73 = vmatprep.subr.mxu0 0.0
  %74 = vmatpush1.msra.mxu0 0.0
  %75 = vmatprep.subr.mxu0 0.0
  %76 = vmatpush1.msra.mxu0 0.0
  %77 = vmatprep.subr.mxu0 0.0
  %78 = vmatpush1.msra.mxu0 0.0
  %79 = vmatprep.subr.mxu0 0.0
  %80 = vmatpush1.msra.mxu0 0.0
  %81 = vmatprep.subr.mxu0 0.0
  %82 = vmatpush1.msra.mxu0 0.0
  %83 = vmatprep.subr.mxu0 0.0
  %84 = vmatpush1.msra.mxu0 0.0
  %85 = vmatprep.subr.mxu0 0.0
  %86 = vmatpush1.msra.mxu0 0.0
  %87 = vmatprep.subr.mxu0 0.0
  %88 = vmatpush1.msra.mxu0 0.0
  %89 = vmatprep.subr.mxu0 0.0
  %90 = vmatpush1.msra.mxu0 0.0
  %91 = vmatprep.subr.mxu0 0.0
  %92 = vmatpush1.msra.mxu0 0.0
  %93 = vmatprep.subr.mxu0 0.0
  %94 = vmatpush1.msra.mxu0 0.0
  %95 = vmatprep.subr.mxu0 0.0
  %96 = vmatpush1.msra.mxu0 0.0
  %97 = vmatprep.subr.mxu0 0.0
  %98 = vmatpush1.msra.mxu0 0.0
  %99 = vmatprep.subr.mxu0 0.0
  %100 = vmatpush1.msra.mxu0 0.0
  %101 = vmatprep.subr.mxu0 0.0
  %102 = vmatpush1.msra.mxu0 0.0
  %103 = vmatprep.subr.mxu0 0.0
  %104 = vmatpush1.msra.mxu0 0.0
  %105 = vmatprep.subr.mxu0 0.0
  %106 = vmatpush1.msra.mxu0 0.0
  %107 = vmatprep.subr.mxu0 0.0
  %108 = vmatpush1.msra.mxu0 0.0
  %109 = vmatprep.subr.mxu0 0.0
  %110 = vmatpush1.msra.mxu0 0.0
  %111 = vmatprep.subr.mxu0 0.0
  %112 = vmatpush1.msra.mxu0 0.0
  %113 = vmatprep.subr.mxu0 0.0
  %114 = vmatpush1.msra.mxu0 0.0
  %115 = vmatprep.subr.mxu0 0.0
  %116 = vmatpush1.msra.mxu0 0.0
  %117 = vmatprep.subr.mxu0 0.0
  %118 = vmatpush1.msra.mxu0 0.0
  %119 = vmatprep.subr.mxu0 0.0
  %120 = vmatpush1.msra.mxu0 0.0
  %121 = vmatprep.subr.mxu0 0.0
  %122 = vmatpush1.msra.mxu0 0.0
  %123 = vmatprep.subr.mxu0 0.0
  %124 = vmatpush1.msra.mxu0 0.0
  %125 = vmatprep.subr.mxu0 0.0
  %126 = vmatpush1.msra.mxu0 0.0
  %127 = vmatprep.subr.mxu0 0.0
  %128 = vmatpush1.msra.mxu0 0.0
  %129 = vmatprep.mubr.f32.mxu0 0.0
  %130 = vmatmul.mubr.f32.gmra.mrb[0].mxu0 %v42
  %v131 = vpop.f32.mrb[0].mxu0
  %v132 = vadd.f32 %v38, %v131
  %v133 = vpop.f32.mrb[0].mxu0
  %134 = vmatprep.mubr.f32.mxu0 0.0
  %135 = vmatmul.mubr.f32.gmra.mrb[0].mxu0 %v45
  %v136 = vpop.f32.mrb[0].mxu0
  %v137 = vadd.f32 %v38, %v136
  %v138 = vpop.f32.mrb[0].mxu0
  %139 = vmatprep.mubr.f32.mxu0 0.0
  %140 = vmatmul.mubr.f32.gmra.mrb[0].mxu0 %v48
  %v141 = vpop.f32.mrb[0].mxu0
  %v142 = vadd.f32 %v38, %v141
  %v143 = vpop.f32.mrb[0].mxu0
  %144 = vmatprep.mubr.f32.mxu0 0.0
  %145 = vmatmul.mubr.f32.gmra.mrb[0].mxu0 %v51
  %v146 = vpop.f32.mrb[0].mxu0
  %v147 = vadd.f32 %v38, %v146
  %v148 = vpop.f32.mrb[0].mxu0
  %149 = vmatprep.mubr.f32.mxu0 0.0
  %150 = vmatmul.mubr.f32.gmra.mrb[0].mxu0 %v54
  %v151 = vpop.f32.mrb[0].mxu0
  %v152 = vadd.f32 %v38, %v151
  %v153 = vpop.f32.mrb[0].mxu0
  %154 = vmatprep.mubr.f32.mxu0 0.0
  %155 = vmatmul.mubr.f32.gmra.mrb[0].mxu0 %v57
  %v156 = vpop.f32.mrb[0].mxu0
  %v157 = vadd.f32 %v38, %v156
  %v158 = vpop.f32.mrb[0].mxu0
  %159 = vmatprep.mubr.f32.mxu0 0.0
  %160 = vmatmul.mubr.f32.gmra.mrb[0].mxu0 %v60
  %v161 = vpop.f32.mrb[0].mxu0
  %v162 = vadd.f32 %v38, %v161
  %v163 = vpop.f32.mrb[0].mxu0
  %164 = vmatprep.mubr.f32.mxu0 0.0
  %165 = vmatmul.mubr.f32.gmra.mrb[0].mxu0 %v63
  %v166 = vpop.f32.mrb[0].mxu0
  %v167 = vadd.f32 %v38, %v166
  %v168 = vpop.f32.mrb[0].mxu0
  %169 = vdwg.mxu0
  %170 = vst [vmem:[#allocation2] sm:$0xff] %v132
  %171 = vst [vmem:[#allocation2 + $0x8] sm:$0xff] %v137
  %172 = vst [vmem:[#allocation2 + $0x10] sm:$0xff] %v142
  %173 = vst [vmem:[#allocation2 + $0x18] sm:$0xff] %v147
  %174 = vst [vmem:[#allocation2 + $0x20] sm:$0xff] %v152
  %175 = vst [vmem:[#allocation2 + $0x28] sm:$0xff] %v157
  %176 = vst [vmem:[#allocation2 + $0x30] sm:$0xff] %v162
  %177 = vst [vmem:[#allocation2 + $0x38] sm:$0xff] %v167
  loop: start=0, step=1, limit=8
  $region22: #{lstm_model_forward.2} parent=0 // loop_pre_header
    _
  $region23: #{lstm_model_forward.2} parent=0 // loop_header
    %s179 = sphi 0, %s183
    %p180 = scmp.ge.s32.totalorder %s179, 8
  $region24: #{lstm_model_forward.2} parent=0 // loop_header_branch
    %182 = sbr.rel (%p180) target = $region28
  $region25: #{lstm_model_forward.2} parent=0 // loop_body
    %s184 = smul.u32 %s179, 8
    %s185 = scalar_lea.vmem [#allocation2], %s184
    %v186 = vld [vmem:[%s185] sm:$0xff]
    %v187 = vld [vmem:[#allocation3] sm:$0xff]
    %v188 = vld [vmem:[%s2] sm:$0xff]
    %v189 = vld [vmem:[%s2 + $0x8] sm:$0xff]
    %v190 = vld [vmem:[%s2 + $0x10] sm:$0xff]
    %v191 = vld [vmem:[%s2 + $0x18] sm:$0xff]
    %vm192 = vcmask 261120
    %v194 = vsel %vm192, %v187, 0
    %196 = vmatprep.subr.mxu0 0.0
    %197 = vmatpush1.msra.mxu0 %v188
    %198 = vmatprep.subr.mxu0 0.0
    %199 = vmatpush1.msra.mxu0 %v189
    %200 = vmatprep.subr.mxu0 0.0
    %201 = vmatpush1.msra.mxu0 %v190
    %202 = vmatprep.subr.mxu0 0.0
    %203 = vmatpush1.msra.mxu0 %v191
    %204 = vmatprep.subr.mxu0 0.0
    %205 = vmatpush1.msra.mxu0 0.0
    %206 = vmatprep.subr.mxu0 0.0
    %207 = vmatpush1.msra.mxu0 0.0
    %208 = vmatprep.subr.mxu0 0.0
    %209 = vmatpush1.msra.mxu0 0.0
    %210 = vmatprep.subr.mxu0 0.0
    %211 = vmatpush1.msra.mxu0 0.0
    %212 = vmatprep.subr.mxu0 0.0
    %213 = vmatpush1.msra.mxu0 0.0
    %214 = vmatprep.subr.mxu0 0.0
    %215 = vmatpush1.msra.mxu0 0.0
    %216 = vmatprep.subr.mxu0 0.0
    %217 = vmatpush1.msra.mxu0 0.0
    %218 = vmatprep.subr.mxu0 0.0
    %219 = vmatpush1.msra.mxu0 0.0
    %220 = vmatprep.subr.mxu0 0.0
    %221 = vmatpush1.msra.mxu0 0.0
    %222 = vmatprep.subr.mxu0 0.0
    %223 = vmatpush1.msra.mxu0 0.0
    %224 = vmatprep.subr.mxu0 0.0
    %225 = vmatpush1.msra.mxu0 0.0
    %226 = vmatprep.subr.mxu0 0.0
    %227 = vmatpush1.msra.mxu0 0.0
    %228 = vmatprep.subr.mxu0 0.0
    %229 = vmatpush1.msra.mxu0 0.0
    %230 = vmatprep.subr.mxu0 0.0
    %231 = vmatpush1.msra.mxu0 0.0
    %232 = vmatprep.subr.mxu0 0.0
    %233 = vmatpush1.msra.mxu0 0.0
    %234 = vmatprep.subr.mxu0 0.0
    %235 = vmatpush1.msra.mxu0 0.0
    %236 = vmatprep.subr.mxu0 0.0
    %237 = vmatpush1.msra.mxu0 0.0
    %238 = vmatprep.subr.mxu0 0.0
    %239 = vmatpush1.msra.mxu0 0.0
    %240 = vmatprep.subr.mxu0 0.0
    %241 = vmatpush1.msra.mxu0 0.0
    %242 = vmatprep.subr.mxu0 0.0
    %243 = vmatpush1.msra.mxu0 0.0
    %244 = vmatprep.subr.mxu0 0.0
    %245 = vmatpush1.msra.mxu0 0.0
    %246 = vmatprep.subr.mxu0 0.0
    %247 = vmatpush1.msra.mxu0 0.0
    %248 = vmatprep.subr.mxu0 0.0
    %249 = vmatpush1.msra.mxu0 0.0
    %250 = vmatprep.subr.mxu0 0.0
    %251 = vmatpush1.msra.mxu0 0.0
    %252 = vmatprep.subr.mxu0 0.0
    %253 = vmatpush1.msra.mxu0 0.0
    %254 = vmatprep.subr.mxu0 0.0
    %255 = vmatpush1.msra.mxu0 0.0
    %256 = vmatprep.subr.mxu0 0.0
    %257 = vmatpush1.msra.mxu0 0.0
    %258 = vmatprep.subr.mxu0 0.0
    %259 = vmatpush1.msra.mxu0 0.0
    %260 = vmatprep.mubr.f32.mxu0 0.0
    %261 = vmatmul.mubr.f32.gmra.mrb[0].mxu0 %v194
    %v262 = vpop.f32.mrb[0].mxu0
    %v263 = vadd.f32 0.0, %v262
    %v264 = vpop.f32.mrb[0].mxu0
    %265 = vdwg.mxu0
    %v266 = vadd.f32 %v186, %v263
    %v267 = vmul.f32 %v266, 0.5
    %v268 = vtanh.pop %v267
    %v269 = vmul.f32 %v268, 0.5
    %v270 = vadd.f32 %v269, 0.5
    %v271 = vtanh.pop %v266
    %v272 = vld [vmem:[#allocation4] sm:$0xff]
    %274 = vrot.lane.b32.xlu0 %v272, 32
    %v275 = vpop.permute.xlu0 %274
    %v277 = vmul.f32 %v270, %v275
    %279 = vrot.lane.b32.xlu0 %v271, 32
    %v280 = vpop.permute.xlu0 %279
    %v282 = vmul.f32 %v270, %v280
    %284 = vrot.lane.b32.xlu0 %v282, 32
    %v285 = vpop.permute.xlu0 %284
    %v287 = vadd.f32 %v277, %v285
    %v288 = vtanh.pop %v287
    %290 = vrot.lane.b32.xlu0 %v288, 32
    %v291 = vpop.permute.xlu0 %290
    %v293 = vmul.f32 %v270, %v291
    %295 = vrot.lane.b32.xlu0 %v287, 96
    %v296 = vpop.permute.xlu0 %295
    %298 = vst.msk [vmem:[#allocation4] sm:$0xff] %vm192, %v296
    %300 = vrot.lane.b32.xlu0 %v293, 64
    %v301 = vpop.permute.xlu0 %300
    %303 = vst.msk [vmem:[#allocation3] sm:$0xff] %vm192, %v301
    %s304 = scalar_lea.vmem %s4, %s184
    %305 = vst.msk [vmem:[%s304] sm:$0xff] %vm192, %v301
  $region26: #{lstm_model_forward.2} parent=0 // loop_footer
    %s183 = sadd.s32 1, %s179
  $region27: #{lstm_model_forward.2} parent=0 // loop_footer_branch
    %178 = sbr.rel target = $region23
  $region28: #{lstm_model_forward.2} parent=0 // loop_exit
    _
  // Predicated region
  $region29: #{lstm_model_forward.2} parent=0 // pred_check
    _
  $region30: #{lstm_model_forward.2} parent=0 // pred_check_branch
    %307 = sbr.rel (0) target = $region32
  $region31: #{lstm_model_forward.2} parent=0 // pred_region
    _
  $region32: #{lstm_model_forward.2} parent=0 // pred_fallthru
    _
  // Predicated region
  $region33: #{lstm_model_forward.2} parent=0 // pred_check
    _
  $region34: #{lstm_model_forward.2} parent=0 // pred_check_branch
    %309 = sbr.rel (0) target = $region36
  $region35: #{lstm_model_forward.2} parent=0 // pred_region
    _
  $region36: #{lstm_model_forward.2} parent=0 // pred_fallthru
    _

// kernel: lstm_model_forward.3
$region0: #{lstm_model_forward.3}
  #allocation0 [shape = 'u32[]', space=smem, size = 0x4, offset = 0x4, fixed_abs, tag = 'smem constant byte address 0x4 - core index']
  #allocation1 [shape = 'u32[144,128]{1,0:T(1,128)}', space=vmem, size = 0x12000, scoped, tag = 'internal scratch']
  #allocation2 [shape = 'f32[64,128]{1,0:T(8,128)}', space=vmem, size = 0x8000, scoped, tag = 'scratch operand']
  #allocation3 [shape = 'f32[8,32]{1,0:T(8,128)}', space=vmem, size = 0x1000, scoped, tag = 'scratch operand']
  #allocation4 [shape = 'f32[8,32]{1,0:T(8,128)}', space=vmem, size = 0x1000, scoped, tag = 'scratch operand']
  %s0 = inlined_call_operand.vmem [shape: f32[1,64,32], index: 0, kind: input, shape index: {}]
  %s1 = inlined_call_operand.vmem [shape: f32[32,128], index: 1, kind: input, shape index: {}]
  %s2 = inlined_call_operand.vmem [shape: f32[32,128], index: 2, kind: input, shape index: {}]
  %s3 = inlined_call_operand.vmem [shape: f32[1,128], index: 3, kind: input, shape index: {}]
  %s4 = inlined_call_operand.vmem [shape: f32[32,4], index: 4, kind: input, shape index: {}]
  %s5 = inlined_call_operand.vmem [shape: f32[1,4], index: 5, kind: input, shape index: {}]
  %s6 = inlined_call_operand.vmem [shape: f32[1,8,4], index: 6, kind: output, shape index: {}]
  %s7 = sld [smem:[#allocation0]]
  $region49: #{lstm_model_forward.3} parent=0
    _
  %s9 = ssub.s32 1, %s7
  %s10 = scalar_select 0, %s9, %s7
  // Predicated region
  $region2: #{lstm_model_forward.3} parent=0 // pred_check
    _
  $region3: #{lstm_model_forward.3} parent=0 // pred_check_branch
    %12 = sbr.rel (0) target = $region5
  $region4: #{lstm_model_forward.3} parent=0 // pred_region
    _
  $region5: #{lstm_model_forward.3} parent=0 // pred_fallthru
    _
  // Predicated region
  $region6: #{lstm_model_forward.3} parent=0 // pred_check
    _
  $region7: #{lstm_model_forward.3} parent=0 // pred_check_branch
    %14 = sbr.rel (0) target = $region9
  $region8: #{lstm_model_forward.3} parent=0 // pred_region
    _
  $region9: #{lstm_model_forward.3} parent=0 // pred_fallthru
    _
  // Predicated region
  $region10: #{lstm_model_forward.3} parent=0 // pred_check
    _
  $region11: #{lstm_model_forward.3} parent=0 // pred_check_branch
    %16 = sbr.rel (0) target = $region13
  $region12: #{lstm_model_forward.3} parent=0 // pred_region
    _
  $region13: #{lstm_model_forward.3} parent=0 // pred_fallthru
    _
  // Predicated region
  $region14: #{lstm_model_forward.3} parent=0 // pred_check
    _
  $region15: #{lstm_model_forward.3} parent=0 // pred_check_branch
    %18 = sbr.rel (0) target = $region17
  $region16: #{lstm_model_forward.3} parent=0 // pred_region
    _
  $region17: #{lstm_model_forward.3} parent=0 // pred_fallthru
    _
  // Predicated region
  $region18: #{lstm_model_forward.3} parent=0 // pred_check
    _
  $region19: #{lstm_model_forward.3} parent=0 // pred_check_branch
    %20 = sbr.rel (0) target = $region21
  $region20: #{lstm_model_forward.3} parent=0 // pred_region
    _
  $region21: #{lstm_model_forward.3} parent=0 // pred_fallthru
    _
  // Predicated region
  $region22: #{lstm_model_forward.3} parent=0 // pred_check
    _
  $region23: #{lstm_model_forward.3} parent=0 // pred_check_branch
    %22 = sbr.rel (0) target = $region25
  $region24: #{lstm_model_forward.3} parent=0 // pred_region
    _
  $region25: #{lstm_model_forward.3} parent=0 // pred_fallthru
    _
  %p23 = scmp.eq.s32.totalorder 0, 0
  // Predicated region
  $region26: #{lstm_model_forward.3} parent=0 // pred_check
    %p24 = pneg %p23
  $region27: #{lstm_model_forward.3} parent=0 // pred_check_branch
    %26 = sbr.rel (%p24) target = $region29
  $region28: #{lstm_model_forward.3} parent=0 // pred_region
    %vm27 = vcmask 261120
    %28 = vst.msk [vmem:[#allocation3] sm:$0xff] %vm27, 0.0
    %29 = vst.msk [vmem:[#allocation4] sm:$0xff] %vm27, 0.0
  $region29: #{lstm_model_forward.3} parent=0 // pred_fallthru
    _
  %v30 = vld [vmem:[%s0] sm:$0xff]
  %v31 = vld [vmem:[%s0 + $0x8] sm:$0xff]
  %v32 = vld [vmem:[%s0 + $0x10] sm:$0xff]
  %v33 = vld [vmem:[%s0 + $0x18] sm:$0xff]
  %v34 = vld [vmem:[%s0 + $0x20] sm:$0xff]
  %v35 = vld [vmem:[%s0 + $0x28] sm:$0xff]
  %v36 = vld [vmem:[%s0 + $0x30] sm:$0xff]
  %v37 = vld [vmem:[%s0 + $0x38] sm:$0xff]
  %v38 = vld [vmem:[%s1] sm:$0xff]
  %v39 = vld [vmem:[%s1 + $0x8] sm:$0xff]
  %v40 = vld [vmem:[%s1 + $0x10] sm:$0xff]
  %v41 = vld [vmem:[%s1 + $0x18] sm:$0xff]
  %v42 = vld [vmem:[%s3] sm:$0x1]
  %v44 = vlaneseq
  %v45 = vshrl.u32 %v44, 7
  %v46 = vsub.s32 0, %v45
  %v47 = vrot.slane %v42, %v46
  %vm49 = vcmask 261120
  %v51 = vsel %vm49, %v30, 0
  %v54 = vsel %vm49, %v31, 0
  %v57 = vsel %vm49, %v32, 0
  %v60 = vsel %vm49, %v33, 0
  %v63 = vsel %vm49, %v34, 0
  %v66 = vsel %vm49, %v35, 0
  %v69 = vsel %vm49, %v36, 0
  %v72 = vsel %vm49, %v37, 0
  %74 = vmatprep.subr.mxu0 0.0
  %75 = vmatpush1.msra.mxu0 %v38
  %76 = vmatprep.subr.mxu0 0.0
  %77 = vmatpush1.msra.mxu0 %v39
  %78 = vmatprep.subr.mxu0 0.0
  %79 = vmatpush1.msra.mxu0 %v40
  %80 = vmatprep.subr.mxu0 0.0
  %81 = vmatpush1.msra.mxu0 %v41
  %82 = vmatprep.subr.mxu0 0.0
  %83 = vmatpush1.msra.mxu0 0.0
  %84 = vmatprep.subr.mxu0 0.0
  %85 = vmatpush1.msra.mxu0 0.0
  %86 = vmatprep.subr.mxu0 0.0
  %87 = vmatpush1.msra.mxu0 0.0
  %88 = vmatprep.subr.mxu0 0.0
  %89 = vmatpush1.msra.mxu0 0.0
  %90 = vmatprep.subr.mxu0 0.0
  %91 = vmatpush1.msra.mxu0 0.0
  %92 = vmatprep.subr.mxu0 0.0
  %93 = vmatpush1.msra.mxu0 0.0
  %94 = vmatprep.subr.mxu0 0.0
  %95 = vmatpush1.msra.mxu0 0.0
  %96 = vmatprep.subr.mxu0 0.0
  %97 = vmatpush1.msra.mxu0 0.0
  %98 = vmatprep.subr.mxu0 0.0
  %99 = vmatpush1.msra.mxu0 0.0
  %100 = vmatprep.subr.mxu0 0.0
  %101 = vmatpush1.msra.mxu0 0.0
  %102 = vmatprep.subr.mxu0 0.0
  %103 = vmatpush1.msra.mxu0 0.0
  %104 = vmatprep.subr.mxu0 0.0
  %105 = vmatpush1.msra.mxu0 0.0
  %106 = vmatprep.subr.mxu0 0.0
  %107 = vmatpush1.msra.mxu0 0.0
  %108 = vmatprep.subr.mxu0 0.0
  %109 = vmatpush1.msra.mxu0 0.0
  %110 = vmatprep.subr.mxu0 0.0
  %111 = vmatpush1.msra.mxu0 0.0
  %112 = vmatprep.subr.mxu0 0.0
  %113 = vmatpush1.msra.mxu0 0.0
  %114 = vmatprep.subr.mxu0 0.0
  %115 = vmatpush1.msra.mxu0 0.0
  %116 = vmatprep.subr.mxu0 0.0
  %117 = vmatpush1.msra.mxu0 0.0
  %118 = vmatprep.subr.mxu0 0.0
  %119 = vmatpush1.msra.mxu0 0.0
  %120 = vmatprep.subr.mxu0 0.0
  %121 = vmatpush1.msra.mxu0 0.0
  %122 = vmatprep.subr.mxu0 0.0
  %123 = vmatpush1.msra.mxu0 0.0
  %124 = vmatprep.subr.mxu0 0.0
  %125 = vmatpush1.msra.mxu0 0.0
  %126 = vmatprep.subr.mxu0 0.0
  %127 = vmatpush1.msra.mxu0 0.0
  %128 = vmatprep.subr.mxu0 0.0
  %129 = vmatpush1.msra.mxu0 0.0
  %130 = vmatprep.subr.mxu0 0.0
  %131 = vmatpush1.msra.mxu0 0.0
  %132 = vmatprep.subr.mxu0 0.0
  %133 = vmatpush1.msra.mxu0 0.0
  %134 = vmatprep.subr.mxu0 0.0
  %135 = vmatpush1.msra.mxu0 0.0
  %136 = vmatprep.subr.mxu0 0.0
  %137 = vmatpush1.msra.mxu0 0.0
  %138 = vmatprep.mubr.f32.mxu0 0.0
  %139 = vmatmul.mubr.f32.gmra.mrb[0].mxu0 %v51
  %v140 = vpop.f32.mrb[0].mxu0
  %v141 = vadd.f32 %v47, %v140
  %v142 = vpop.f32.mrb[0].mxu0
  %143 = vmatprep.mubr.f32.mxu0 0.0
  %144 = vmatmul.mubr.f32.gmra.mrb[0].mxu0 %v54
  %v145 = vpop.f32.mrb[0].mxu0
  %v146 = vadd.f32 %v47, %v145
  %v147 = vpop.f32.mrb[0].mxu0
  %148 = vmatprep.mubr.f32.mxu0 0.0
  %149 = vmatmul.mubr.f32.gmra.mrb[0].mxu0 %v57
  %v150 = vpop.f32.mrb[0].mxu0
  %v151 = vadd.f32 %v47, %v150
  %v152 = vpop.f32.mrb[0].mxu0
  %153 = vmatprep.mubr.f32.mxu0 0.0
  %154 = vmatmul.mubr.f32.gmra.mrb[0].mxu0 %v60
  %v155 = vpop.f32.mrb[0].mxu0
  %v156 = vadd.f32 %v47, %v155
  %v157 = vpop.f32.mrb[0].mxu0
  %158 = vmatprep.mubr.f32.mxu0 0.0
  %159 = vmatmul.mubr.f32.gmra.mrb[0].mxu0 %v63
  %v160 = vpop.f32.mrb[0].mxu0
  %v161 = vadd.f32 %v47, %v160
  %v162 = vpop.f32.mrb[0].mxu0
  %163 = vmatprep.mubr.f32.mxu0 0.0
  %164 = vmatmul.mubr.f32.gmra.mrb[0].mxu0 %v66
  %v165 = vpop.f32.mrb[0].mxu0
  %v166 = vadd.f32 %v47, %v165
  %v167 = vpop.f32.mrb[0].mxu0
  %168 = vmatprep.mubr.f32.mxu0 0.0
  %169 = vmatmul.mubr.f32.gmra.mrb[0].mxu0 %v69
  %v170 = vpop.f32.mrb[0].mxu0
  %v171 = vadd.f32 %v47, %v170
  %v172 = vpop.f32.mrb[0].mxu0
  %173 = vmatprep.mubr.f32.mxu0 0.0
  %174 = vmatmul.mubr.f32.gmra.mrb[0].mxu0 %v72
  %v175 = vpop.f32.mrb[0].mxu0
  %v176 = vadd.f32 %v47, %v175
  %v177 = vpop.f32.mrb[0].mxu0
  %178 = vdwg.mxu0
  %179 = vst [vmem:[#allocation2] sm:$0xff] %v141
  %180 = vst [vmem:[#allocation2 + $0x8] sm:$0xff] %v146
  %181 = vst [vmem:[#allocation2 + $0x10] sm:$0xff] %v151
  %182 = vst [vmem:[#allocation2 + $0x18] sm:$0xff] %v156
  %183 = vst [vmem:[#allocation2 + $0x20] sm:$0xff] %v161
  %184 = vst [vmem:[#allocation2 + $0x28] sm:$0xff] %v166
  %185 = vst [vmem:[#allocation2 + $0x30] sm:$0xff] %v171
  %186 = vst [vmem:[#allocation2 + $0x38] sm:$0xff] %v176
  loop: start=0, step=1, limit=8
  $region30: #{lstm_model_forward.3} parent=0 // loop_pre_header
    _
  $region31: #{lstm_model_forward.3} parent=0 // loop_header
    %s188 = sphi 0, %s192
    %p189 = scmp.ge.s32.totalorder %s188, 8
  $region32: #{lstm_model_forward.3} parent=0 // loop_header_branch
    %191 = sbr.rel (%p189) target = $region36
  $region33: #{lstm_model_forward.3} parent=0 // loop_body
    %s193 = smul.u32 %s188, 8
    %s194 = scalar_lea.vmem [#allocation2], %s193
    %v195 = vld [vmem:[%s194] sm:$0xff]
    %v196 = vld [vmem:[#allocation3] sm:$0xff]
    %v197 = vld [vmem:[%s2] sm:$0xff]
    %v198 = vld [vmem:[%s2 + $0x8] sm:$0xff]
    %v199 = vld [vmem:[%s2 + $0x10] sm:$0xff]
    %v200 = vld [vmem:[%s2 + $0x18] sm:$0xff]
    %v202 = vsel %vm49, %v196, 0
    %204 = vmatprep.subr.mxu0 0.0
    %205 = vmatpush1.msra.mxu0 %v197
    %206 = vmatprep.subr.mxu0 0.0
    %207 = vmatpush1.msra.mxu0 %v198
    %208 = vmatprep.subr.mxu0 0.0
    %209 = vmatpush1.msra.mxu0 %v199
    %210 = vmatprep.subr.mxu0 0.0
    %211 = vmatpush1.msra.mxu0 %v200
    %212 = vmatprep.subr.mxu0 0.0
    %213 = vmatpush1.msra.mxu0 0.0
    %214 = vmatprep.subr.mxu0 0.0
    %215 = vmatpush1.msra.mxu0 0.0
    %216 = vmatprep.subr.mxu0 0.0
    %217 = vmatpush1.msra.mxu0 0.0
    %218 = vmatprep.subr.mxu0 0.0
    %219 = vmatpush1.msra.mxu0 0.0
    %220 = vmatprep.subr.mxu0 0.0
    %221 = vmatpush1.msra.mxu0 0.0
    %222 = vmatprep.subr.mxu0 0.0
    %223 = vmatpush1.msra.mxu0 0.0
    %224 = vmatprep.subr.mxu0 0.0
    %225 = vmatpush1.msra.mxu0 0.0
    %226 = vmatprep.subr.mxu0 0.0
    %227 = vmatpush1.msra.mxu0 0.0
    %228 = vmatprep.subr.mxu0 0.0
    %229 = vmatpush1.msra.mxu0 0.0
    %230 = vmatprep.subr.mxu0 0.0
    %231 = vmatpush1.msra.mxu0 0.0
    %232 = vmatprep.subr.mxu0 0.0
    %233 = vmatpush1.msra.mxu0 0.0
    %234 = vmatprep.subr.mxu0 0.0
    %235 = vmatpush1.msra.mxu0 0.0
    %236 = vmatprep.subr.mxu0 0.0
    %237 = vmatpush1.msra.mxu0 0.0
    %238 = vmatprep.subr.mxu0 0.0
    %239 = vmatpush1.msra.mxu0 0.0
    %240 = vmatprep.subr.mxu0 0.0
    %241 = vmatpush1.msra.mxu0 0.0
    %242 = vmatprep.subr.mxu0 0.0
    %243 = vmatpush1.msra.mxu0 0.0
    %244 = vmatprep.subr.mxu0 0.0
    %245 = vmatpush1.msra.mxu0 0.0
    %246 = vmatprep.subr.mxu0 0.0
    %247 = vmatpush1.msra.mxu0 0.0
    %248 = vmatprep.subr.mxu0 0.0
    %249 = vmatpush1.msra.mxu0 0.0
    %250 = vmatprep.subr.mxu0 0.0
    %251 = vmatpush1.msra.mxu0 0.0
    %252 = vmatprep.subr.mxu0 0.0
    %253 = vmatpush1.msra.mxu0 0.0
    %254 = vmatprep.subr.mxu0 0.0
    %255 = vmatpush1.msra.mxu0 0.0
    %256 = vmatprep.subr.mxu0 0.0
    %257 = vmatpush1.msra.mxu0 0.0
    %258 = vmatprep.subr.mxu0 0.0
    %259 = vmatpush1.msra.mxu0 0.0
    %260 = vmatprep.subr.mxu0 0.0
    %261 = vmatpush1.msra.mxu0 0.0
    %262 = vmatprep.subr.mxu0 0.0
    %263 = vmatpush1.msra.mxu0 0.0
    %264 = vmatprep.subr.mxu0 0.0
    %265 = vmatpush1.msra.mxu0 0.0
    %266 = vmatprep.subr.mxu0 0.0
    %267 = vmatpush1.msra.mxu0 0.0
    %268 = vmatprep.mubr.f32.mxu0 0.0
    %269 = vmatmul.mubr.f32.gmra.mrb[0].mxu0 %v202
    %v270 = vpop.f32.mrb[0].mxu0
    %v271 = vadd.f32 0.0, %v270
    %v272 = vpop.f32.mrb[0].mxu0
    %273 = vdwg.mxu0
    %v274 = vadd.f32 %v195, %v271
    %v275 = vmul.f32 %v274, 0.5
    %v276 = vtanh.pop %v275
    %v277 = vmul.f32 %v276, 0.5
    %v278 = vadd.f32 %v277, 0.5
    %v279 = vtanh.pop %v274
    %v280 = vld [vmem:[#allocation4] sm:$0xff]
    %282 = vrot.lane.b32.xlu0 %v280, 32
    %v283 = vpop.permute.xlu0 %282
    %v285 = vmul.f32 %v278, %v283
    %287 = vrot.lane.b32.xlu0 %v279, 32
    %v288 = vpop.permute.xlu0 %287
    %v290 = vmul.f32 %v278, %v288
    %292 = vrot.lane.b32.xlu0 %v290, 32
    %v293 = vpop.permute.xlu0 %292
    %v295 = vadd.f32 %v285, %v293
    %v296 = vtanh.pop %v295
    %298 = vrot.lane.b32.xlu0 %v296, 32
    %v299 = vpop.permute.xlu0 %298
    %v301 = vmul.f32 %v278, %v299
    %303 = vrot.lane.b32.xlu0 %v295, 96
    %v304 = vpop.permute.xlu0 %303
    %306 = vst.msk [vmem:[#allocation4] sm:$0xff] %vm49, %v304
    %308 = vrot.lane.b32.xlu0 %v301, 64
    %v309 = vpop.permute.xlu0 %308
    %311 = vst.msk [vmem:[#allocation3] sm:$0xff] %vm49, %v309
  $region34: #{lstm_model_forward.3} parent=0 // loop_footer
    %s192 = sadd.s32 1, %s188
  $region35: #{lstm_model_forward.3} parent=0 // loop_footer_branch
    %187 = sbr.rel target = $region31
  $region36: #{lstm_model_forward.3} parent=0 // loop_exit
    _
  // Predicated region
  $region37: #{lstm_model_forward.3} parent=0 // pred_check
    %p312 = pneg %p23
  $region38: #{lstm_model_forward.3} parent=0 // pred_check_branch
    %314 = sbr.rel (%p312) target = $region40
  $region39: #{lstm_model_forward.3} parent=0 // pred_region
    %v315 = vld [vmem:[#allocation3] sm:$0xff]
    %v316 = vld [vmem:[%s4] sm:$0xff]
    %v317 = vld [vmem:[%s4 + $0x8] sm:$0xff]
    %v318 = vld [vmem:[%s4 + $0x10] sm:$0xff]
    %v319 = vld [vmem:[%s4 + $0x18] sm:$0xff]
    %v320 = vld [vmem:[%s5] sm:$0x1]
    %v322 = vlaneseq
    %v323 = vshrl.u32 %v322, 7
    %v324 = vsub.s32 0, %v323
    %v325 = vrot.slane %v320, %v324
    %v328 = vsel %vm49, %v315, 0
    %330 = vmatprep.subr.mxu0 0.0
    %331 = vmatpush1.msra.mxu0 %v316
    %332 = vmatprep.subr.mxu0 0.0
    %333 = vmatpush1.msra.mxu0 %v317
    %334 = vmatprep.subr.mxu0 0.0
    %335 = vmatpush1.msra.mxu0 %v318
    %336 = vmatprep.subr.mxu0 0.0
    %337 = vmatpush1.msra.mxu0 %v319
    %338 = vmatprep.subr.mxu0 0.0
    %339 = vmatpush1.msra.mxu0 0.0
    %340 = vmatprep.subr.mxu0 0.0
    %341 = vmatpush1.msra.mxu0 0.0
    %342 = vmatprep.subr.mxu0 0.0
    %343 = vmatpush1.msra.mxu0 0.0
    %344 = vmatprep.subr.mxu0 0.0
    %345 = vmatpush1.msra.mxu0 0.0
    %346 = vmatprep.subr.mxu0 0.0
    %347 = vmatpush1.msra.mxu0 0.0
    %348 = vmatprep.subr.mxu0 0.0
    %349 = vmatpush1.msra.mxu0 0.0
    %350 = vmatprep.subr.mxu0 0.0
    %351 = vmatpush1.msra.mxu0 0.0
    %352 = vmatprep.subr.mxu0 0.0
    %353 = vmatpush1.msra.mxu0 0.0
    %354 = vmatprep.subr.mxu0 0.0
    %355 = vmatpush1.msra.mxu0 0.0
    %356 = vmatprep.subr.mxu0 0.0
    %357 = vmatpush1.msra.mxu0 0.0
    %358 = vmatprep.subr.mxu0 0.0
    %359 = vmatpush1.msra.mxu0 0.0
    %360 = vmatprep.subr.mxu0 0.0
    %361 = vmatpush1.msra.mxu0 0.0
    %362 = vmatprep.subr.mxu0 0.0
    %363 = vmatpush1.msra.mxu0 0.0
    %364 = vmatprep.subr.mxu0 0.0
    %365 = vmatpush1.msra.mxu0 0.0
    %366 = vmatprep.subr.mxu0 0.0
    %367 = vmatpush1.msra.mxu0 0.0
    %368 = vmatprep.subr.mxu0 0.0
    %369 = vmatpush1.msra.mxu0 0.0
    %370 = vmatprep.subr.mxu0 0.0
    %371 = vmatpush1.msra.mxu0 0.0
    %372 = vmatprep.subr.mxu0 0.0
    %373 = vmatpush1.msra.mxu0 0.0
    %374 = vmatprep.subr.mxu0 0.0
    %375 = vmatpush1.msra.mxu0 0.0
    %376 = vmatprep.subr.mxu0 0.0
    %377 = vmatpush1.msra.mxu0 0.0
    %378 = vmatprep.subr.mxu0 0.0
    %379 = vmatpush1.msra.mxu0 0.0
    %380 = vmatprep.subr.mxu0 0.0
    %381 = vmatpush1.msra.mxu0 0.0
    %382 = vmatprep.subr.mxu0 0.0
    %383 = vmatpush1.msra.mxu0 0.0
    %384 = vmatprep.subr.mxu0 0.0
    %385 = vmatpush1.msra.mxu0 0.0
    %386 = vmatprep.subr.mxu0 0.0
    %387 = vmatpush1.msra.mxu0 0.0
    %388 = vmatprep.subr.mxu0 0.0
    %389 = vmatpush1.msra.mxu0 0.0
    %390 = vmatprep.subr.mxu0 0.0
    %391 = vmatpush1.msra.mxu0 0.0
    %392 = vmatprep.subr.mxu0 0.0
    %393 = vmatpush1.msra.mxu0 0.0
    %394 = vmatprep.mubr.f32.mxu0 0.0
    %395 = vmatmul.mubr.f32.gmra.mrb[0].mxu0 %v328
    %v396 = vpop.f32.mrb[0].mxu0
    %v397 = vadd.f32 %v325, %v396
    %v398 = vpop.f32.mrb[0].mxu0
    %399 = vdwg.mxu0
    %vm400 = vcmask 31744
    %401 = vst.msk [vmem:[%s6] sm:$0xff] %vm400, %v397
  $region40: #{lstm_model_forward.3} parent=0 // pred_fallthru
    _
  // Predicated region
  $region41: #{lstm_model_forward.3} parent=0 // pred_check
    _
  $region42: #{lstm_model_forward.3} parent=0 // pred_check_branch
    %403 = sbr.rel (0) target = $region44
  $region43: #{lstm_model_forward.3} parent=0 // pred_region
    _
  $region44: #{lstm_model_forward.3} parent=0 // pred_fallthru
    _
  // Predicated region
  $region45: #{lstm_model_forward.3} parent=0 // pred_check
    _
  $region46: #{lstm_model_forward.3} parent=0 // pred_check_branch
    %405 = sbr.rel (0) target = $region48
  $region47: #{lstm_model_forward.3} parent=0 // pred_region
    _
  $region48: #{lstm_model_forward.3} parent=0 // pred_fallthru
    _

</llo_original>
